<compile_context>
chip_gen: v7x
topology: tpu7x:2x2x1
jax: 0.10.0
libtpu: 0.0.40
codegen_flags: <defaults>
</compile_context>

<pallas_src>
import functools

import jax
import jax.numpy as jnp
from jax.experimental import pallas as pl
from jax.experimental.pallas import tpu as pltpu

NEG_SLOPE = 0.2          # PyG GATConv negative_slope (also the outer leaky_relu)
MASK_NEG = -1e30         # "no edge" sentinel (f32)
LANES = 128
MIB = 1024 * 1024


def _round_up(x, m):
    return (x + m - 1) // m * m


# ---------------------------------------------------------------------------
# Generation-aware configuration (VMEM capacity, tile sizes, exp dtype)
# ---------------------------------------------------------------------------
def _tpu_vmem_capacity_bytes():
    try:
        return int(pltpu.get_tpu_info().vmem_capacity_bytes)
    except Exception:
        return 64 * MIB                       # conservative (v7x per-TC figure)


def _tpu_kind():
    try:
        return jax.devices()[0].device_kind.lower()
    except Exception:
        return ""


def _select_exp_dtype():
    # bf16 EUP exp on v6e/v7x (2x EUP throughput, drops a [T,N] cast pass);
    # keep f32 on v5e / older parts (no bf16 EUP/VPU).
    kind = _tpu_kind()
    return jnp.bfloat16 if ("v6" in kind or "v7" in kind) else jnp.float32


def _bspec(shape, index_map, buffers=None):
    """BlockSpec with an explicit buffer count (1 = single-buffer grid-invariant
    operands, 3 = deeper mask pipelining on v7x).  Falls back to the default
    double-buffered spec if this jax build has no pipeline_mode kwarg."""
    if buffers is None:
        return pl.BlockSpec(shape, index_map)
    try:
        return pl.BlockSpec(shape, index_map, pipeline_mode=pl.Buffered(buffers))
    except Exception:
        return pl.BlockSpec(shape, index_map)


def _largest_divisor_tile(total, target, align):
    best = align
    t = align
    while t <= min(total, target):
        if total % t == 0:
            best = t
        t += align
    return best


def _make_config(n, heads, hidden_ch, out_ch, max_tile_q=None, max_tile_k=None):
    vmem_cap = _tpu_vmem_capacity_bytes()
    # ~100 MiB limit on the 128-MiB parts (v5e/v6e), ~56 MiB on v7x (64 MiB/TC).
    vmem_limit = int(min(100 * MIB, max(vmem_cap - 8 * MIB, 24 * MIB)))
    budget = int(vmem_limit * 0.85)
    big_vmem = vmem_cap >= 96 * MIB
    mask_buf = 3 if vmem_cap <= 64 * MIB else 2   # hide mask DMA latency on v7x

    row_align = 128 if n >= 128 else 32           # int8 mask sublane tile = 32
    n_pad = _round_up(n, row_align)

    tq_target = 256 if big_vmem else 128          # bigger dst tiles on v5e/v6e
    if max_tile_q is not None:
        tq_target = min(tq_target, max_tile_q)
    tq = _largest_divisor_tile(n_pad, tq_target, 32)

    # worst-case per-layer widths for the VMEM estimate
    hcext_pad = _round_up(max(heads * (hidden_ch + 1), out_ch + 1), LANES)
    out_pad_max = _round_up(max(heads * hidden_ch + 1, out_ch), LANES)

    def attn_vmem(tk):
        fixed = (2 * tq * LANES * 4               # dst-logit blocks
                 + 8 * out_pad_max * 4            # bias (single buffer)
                 + 2 * tq * out_pad_max * 4       # output blocks
                 + 2 * heads * tq * LANES * 4)    # m / [acc|denom] scratch
        per = (mask_buf * tq * tk * 1             # int8 mask blocks
               + 2 * tk * hcext_pad * 2           # h_ext blocks (bf16)
               + 2 * 8 * tk * 4                   # srct blocks
               + 4 * tq * tk * 4)                 # live e/p temps in head loop
        return fixed + per

    cands = [n_pad] + [c for c in range(128, n_pad, 128) if n_pad % c == 0]
    cands.sort(reverse=True)
    if max_tile_k is not None:
        allowed = [c for c in cands if c <= max_tile_k]
        cands = allowed or cands[-1:]
    tk = next((c for c in cands if attn_vmem(c) <= budget), cands[-1])
    est = attn_vmem(tk)
    assert est <= vmem_limit, (
        f"attention tile {tq}x{tk} needs ~{est / MIB:.1f} MiB VMEM "
        f"> limit {vmem_limit / MIB:.1f} MiB; reduce tile sizes")

    tp = _largest_divisor_tile(n_pad, 1024, 32)   # decoupled projection tile
    return dict(n_pad=n_pad, tq=tq, tk=tk, tp=tp, mask_buf=mask_buf,
                vmem_limit=vmem_limit, exp_dtype=_select_exp_dtype())


# ---------------------------------------------------------------------------
# Kernel 1: projection + attention logits (one MXU matmul each)
# ---------------------------------------------------------------------------
def _gat_proj_kernel(x_ref, w_ref, a_ref, h_ref, logit_ref):
    # h_ext = x_aug @ W_aug  (bf16 MXU, f32 accumulate).  W_aug interleaves a
    # per-head ones column, fed by the ones lane of x_aug.
    h = jnp.dot(x_ref[...], w_ref[...], preferred_element_type=jnp.float32)
    hb = h.astype(jnp.bfloat16)
    h_ref[...] = hb
    # All per-head [src | dst] logits via ONE matmul against a block-diagonal,
    # 128-lane padded matrix -> a single unmasked lane-dense store.
    logit_ref[...] = jnp.dot(hb, a_ref[...], preferred_element_type=jnp.float32)


# ---------------------------------------------------------------------------
# Kernel 2: flash-style masked softmax over source blocks + aggregation
# ---------------------------------------------------------------------------
def _gat_attn_kernel(mask_ref, hext_ref, dst_ref, srct_ref, bias_ref, out_ref,
                     m_scr, acc_scr, *, heads, out_ch, cext, concat, apply_act,
                     exp_dtype):
    k = pl.program_id(1)
    nk = pl.num_programs(1)

    @pl.when(k == 0)
    def _init():
        m_scr[...] = jnp.full_like(m_scr, MASK_NEG)
        acc_scr[...] = jnp.zeros_like(acc_scr)

    mask = mask_ref[...]                            # int8 (TQ, TK), loaded once
    neg = jnp.float32(MASK_NEG)

    for hd in range(heads):                         # tiny static unroll
        # e[dst, src] = leaky_relu(dst_logit + src_logit), masked additively
        e = dst_ref[:, hd:hd + 1] + srct_ref[hd:hd + 1, :]        # (TQ, TK) f32
        e = jnp.where(e >= 0, e, NEG_SLOPE * e)
        e = jnp.where(mask > 0, e, neg)             # no materialized mbias temp
        m_old = m_scr[hd]                                          # (TQ, 1)
        m_new = jnp.maximum(m_old, jnp.max(e, axis=-1, keepdims=True))
        alpha = jnp.exp(m_old - m_new)                             # (TQ, 1) f32
        p = jnp.exp((e - m_new).astype(exp_dtype))                 # bf16 on v6e/v7x
        # per-head source features as a ref-slice (no full-value slice copies);
        # last column is 1.0 so the f32 MXU accumulation also yields the denom.
        hh = hext_ref[:, hd * cext:(hd + 1) * cext]                # (TK, C+1) bf16
        pacc = jnp.dot(p.astype(jnp.bfloat16), hh,
                       preferred_element_type=jnp.float32)         # (TQ, C+1)
        acc_scr[hd] = alpha * acc_scr[hd] + pacc
        m_scr[hd] = m_new

    @pl.when(k == nk - 1)
    def _finalize():
        outs = []
        for hd in range(heads):
            acc = acc_scr[hd]                                      # (TQ, C+1)
            denom = jnp.maximum(acc[:, out_ch:out_ch + 1], jnp.float32(1e-20))
            outs.append(acc[:, :out_ch] * pl.reciprocal(denom, approx=True))
        if concat:
            out = jnp.concatenate(outs, axis=-1)
        else:
            out = outs[0]
            for o in outs[1:]:
                out = out + o
            out = out * jnp.float32(1.0 / heads)
        pad = out_ref.shape[1] - out.shape[1]                      # lane-pad
        if pad:
            out = jnp.concatenate(
                [out, jnp.zeros((out.shape[0], pad), jnp.float32)], axis=-1)
        out = out + bias_ref[...]                                  # padded bias
        if apply_act:                                              # fused leaky_relu
            out = jnp.where(out >= 0, out, NEG_SLOPE * out)
        out_ref[...] = out.astype(out_ref.dtype)                   # lane-dense store


# ---------------------------------------------------------------------------
# One GATConv layer: projection kernel + flash attention kernel
# ---------------------------------------------------------------------------
def gat_conv_pallas(x, w_aug, a_pad, bias_pad, mask, *, heads, out_ch, out_pad,
                    concat, apply_act, out_dtype, exp_dtype, cfg):
    n_pad, fin = x.shape
    cext = out_ch + 1
    hcext_pad = w_aug.shape[1]
    tq, tk, tp = cfg["tq"], cfg["tk"], cfg["tp"]
    mask_buf, vmem_limit = cfg["mask_buf"], cfg["vmem_limit"]
    assert n_pad % tq == 0 and n_pad % tk == 0 and n_pad % tp == 0

    # ---- kernel 1: projection + logits (large, decoupled row tile) ----------
    h_ext, logits = pl.pallas_call(
        _gat_proj_kernel,
        grid=(n_pad // tp,),
        in_specs=[
            pl.BlockSpec((tp, fin), lambda i: (i, 0)),               # x streamed
            _bspec((fin, hcext_pad), lambda i: (0, 0), buffers=1),   # W_aug resident
            _bspec((hcext_pad, LANES), lambda i: (0, 0), buffers=1), # A resident
        ],
        out_specs=[
            pl.BlockSpec((tp, hcext_pad), lambda i: (i, 0)),
            pl.BlockSpec((tp, LANES), lambda i: (i, 0)),
        ],
        out_shape=(
            jax.ShapeDtypeStruct((n_pad, hcext_pad), jnp.bfloat16),
            jax.ShapeDtypeStruct((n_pad, LANES), jnp.float32),
        ),
        compiler_params=pltpu.CompilerParams(
            dimension_semantics=("parallel",),
            vmem_limit_bytes=vmem_limit),
    )(x, w_aug, a_pad)

    src = logits[:, :heads]                        # [N_pad, H]
    dst = logits[:, heads:2 * heads]               # [N_pad, H]
    srct = jnp.transpose(src)                      # [H, N_pad] (one tiny transpose)

    # ---- kernel 2: online softmax + aggregation over (dst tiles, src blocks) -
    out = pl.pallas_call(
        functools.partial(_gat_attn_kernel, heads=heads, out_ch=out_ch, cext=cext,
                          concat=concat, apply_act=apply_act, exp_dtype=exp_dtype),
        grid=(n_pad // tq, n_pad // tk),
        in_specs=[
            _bspec((tq, tk), lambda i, k: (i, k), buffers=mask_buf),  # int8 mask
            pl.BlockSpec((tk, hcext_pad), lambda i, k: (k, 0)),       # h_ext blocks
            pl.BlockSpec((tq, heads), lambda i, k: (i, 0)),           # dst logits
            pl.BlockSpec((heads, tk), lambda i, k: (0, k)),           # src logits^T
            _bspec((1, out_pad), lambda i, k: (0, 0), buffers=1),     # bias resident
        ],
        out_specs=pl.BlockSpec((tq, out_pad), lambda i, k: (i, 0)),
        out_shape=jax.ShapeDtypeStruct((n_pad, out_pad), out_dtype),
        scratch_shapes=[
            pltpu.VMEM((heads, tq, 1), jnp.float32),       # running max
            pltpu.VMEM((heads, tq, cext), jnp.float32),    # running [acc | denom]
        ],
        compiler_params=pltpu.CompilerParams(
            dimension_semantics=("parallel", "arbitrary"),
            vmem_limit_bytes=vmem_limit),
    )(mask, h_ext, dst, srct, bias_pad)
    return out                          # [N_pad, out_pad]; data in [:, :out_dim]


# ---------------------------------------------------------------------------
# Parameter plumbing: augmented projection / attention matrices
# ---------------------------------------------------------------------------
def _augment_params(w, att_src, att_dst, in_width, ones_row, heads, out_ch):
    """W_aug [in_width, HCext_pad]: per-head [W_h | ones-col]; A_pad [HCext_pad,
    128]: block-diagonal [att_src | att_dst] columns (lane-dense logits)."""
    fin = w.shape[0]
    assert in_width > max(fin - 1, ones_row)
    cext = out_ch + 1
    hcext_pad = _round_up(heads * cext, LANES)
    w_aug = jnp.zeros((in_width, hcext_pad), jnp.float32)
    a_pad = jnp.zeros((hcext_pad, LANES), jnp.float32)
    for hd in range(heads):
        base = hd * cext
        w_aug = w_aug.at[:fin, base:base + out_ch].set(
            w[:, hd * out_ch:(hd + 1) * out_ch])
        w_aug = w_aug.at[ones_row, base + out_ch].set(1.0)
        a_pad = a_pad.at[base:base + out_ch, hd].set(att_src[hd])
        a_pad = a_pad.at[base:base + out_ch, heads + hd].set(att_dst[hd])
    return w_aug.astype(jnp.bfloat16), a_pad.astype(jnp.bfloat16)


# ---------------------------------------------------------------------------
# GAT forward (eval mode): conv -> leaky_relu (fused) -> (dropout=id) ... out_conv
# ---------------------------------------------------------------------------
def gat_forward(x, mask, params, *, max_tile_q=None, max_tile_k=None):
    # TODO(synk): GFN/EdgeSelector sampling path and start_layer early-break are
    # not implemented; this is the default (GFN is None, start_layer=-1) path.
    n, fin = x.shape
    convs = params["convs"]
    out_p = params["out"]
    cfg = _make_config(n, convs[0]["heads"], convs[0]["out_ch"], out_p["out_ch"],
                       max_tile_q=max_tile_q, max_tile_k=max_tile_k)
    n_pad, exp_dtype = cfg["n_pad"], cfg["exp_dtype"]

    # int8 0/1 adjacency: the dominant N^2 HBM stream (2x smaller than bf16).
    # TODO(synk): bit-pack the mask (8 src / byte) + in-kernel unpack for a
    # further 8x on the N^2 stream when HBM-bound (large N on v5e/v6e).
    mask_i8 = jnp.zeros((n_pad, n_pad), jnp.int8).at[:n, :n].set(
        mask.astype(jnp.int8))

    # layer-1 input: bf16 activations with a trailing ones lane (feeds the
    # per-head ones columns of h_ext -> softmax denominator comes off the MXU).
    act = jnp.zeros((n_pad, fin + 1), jnp.bfloat16)
    act = act.at[:n, :fin].set(x.astype(jnp.bfloat16))
    act = act.at[:, fin].set(1.0)
    ones_row = fin

    for layer in convs:
        nh, oc = layer["heads"], layer["out_ch"]
        out_dim = nh * oc
        out_pad = _round_up(out_dim + 1, LANES)   # spare lane hosts next ones col
        w_aug, a_pad = _augment_params(layer["w"], layer["att_src"],
                                       layer["att_dst"], act.shape[1], ones_row,
                                       nh, oc)
        bias_pad = jnp.zeros((1, out_pad), jnp.float32)
        bias_pad = bias_pad.at[0, :out_dim].set(layer["bias"][0])
        bias_pad = bias_pad.at[0, out_dim].set(1.0)   # ones lane for next layer
        act = gat_conv_pallas(act, w_aug, a_pad, bias_pad, mask_i8,
                              heads=nh, out_ch=oc, out_pad=out_pad, concat=True,
                              apply_act=True, out_dtype=jnp.bfloat16,
                              exp_dtype=exp_dtype, cfg=cfg)
        ones_row = out_dim
        # F.dropout(p=0.6, training=False) -> identity in eval mode.

    nh, oc = out_p["heads"], out_p["out_ch"]
    out_pad = _round_up(oc, LANES)
    w_aug, a_pad = _augment_params(out_p["w"], out_p["att_src"], out_p["att_dst"],
                                   act.shape[1], ones_row, nh, oc)
    bias_pad = jnp.zeros((1, out_pad), jnp.float32).at[0, :oc].set(out_p["bias"][0])
    out = gat_conv_pallas(act, w_aug, a_pad, bias_pad, mask_i8,
                          heads=nh, out_ch=oc, out_pad=out_pad, concat=False,
                          apply_act=False, out_dtype=jnp.float32,
                          exp_dtype=exp_dtype, cfg=cfg)
    return out[:n, :oc]


# ---------------------------------------------------------------------------
# Pure-JAX reference (mirrors the kernel's bf16 matmul/exp operand policy)
# ---------------------------------------------------------------------------
def _gat_conv_ref(x, w, att_src, att_dst, bias, mask, *, heads, out_ch, concat,
                  apply_act, exp_dtype):
    xb = x.astype(jnp.bfloat16)
    wb = w.astype(jnp.bfloat16)
    h = jnp.dot(xb, wb, preferred_element_type=jnp.float32)
    hb = h.astype(jnp.bfloat16)
    hf = hb.astype(jnp.float32)
    a_s = att_src.astype(jnp.bfloat16).astype(jnp.float32)
    a_d = att_dst.astype(jnp.bfloat16).astype(jnp.float32)
    mneg = jnp.where(mask > 0, 0.0, MASK_NEG).astype(jnp.float32)
    outs = []
    for hd in range(heads):
        hh = hb[:, hd * out_ch:(hd + 1) * out_ch]
        hhf = hf[:, hd * out_ch:(hd + 1) * out_ch]
        s = jnp.sum(hhf * a_s[hd][None, :], axis=-1, keepdims=True)
        d = jnp.sum(hhf * a_d[hd][None, :], axis=-1, keepdims=True)
        e = d + s.T
        e = jnp.where(e >= 0, e, NEG_SLOPE * e)
        e = e + mneg
        e = e - jnp.max(e, axis=-1, keepdims=True)
        p = jnp.exp(e.astype(exp_dtype))
        pb = p.astype(jnp.bfloat16)
        denom = jnp.sum(pb.astype(jnp.float32), axis=-1, keepdims=True)
        acc = jnp.dot(pb, hh, preferred_element_type=jnp.float32)
        outs.append(acc / denom)
    out = jnp.concatenate(outs, axis=-1) if concat else sum(outs) / heads
    out = out + bias
    if apply_act:
        out = jnp.where(out >= 0, out, NEG_SLOPE * out)
    return out


def gat_forward_ref(x, mask, params, *, exp_dtype):
    act = x
    for layer in params["convs"]:
        act = _gat_conv_ref(act, layer["w"], layer["att_src"], layer["att_dst"],
                            layer["bias"], mask, heads=layer["heads"],
                            out_ch=layer["out_ch"], concat=True, apply_act=True,
                            exp_dtype=exp_dtype)
        act = act.astype(jnp.bfloat16)   # mirror bf16 inter-layer activations
    o = params["out"]
    return _gat_conv_ref(act, o["w"], o["att_src"], o["att_dst"], o["bias"], mask,
                         heads=1, out_ch=o["out_ch"], concat=False,
                         apply_act=False, exp_dtype=exp_dtype)


# ---------------------------------------------------------------------------
# Deterministic parameter / graph construction
# ---------------------------------------------------------------------------
def init_gat_params(key, in_ch, hidden_ch, out_ch, heads, num_layers):
    params = {"convs": [], "out": None}

    def make_conv(key, fin, fout, h, concat):
        k1, k2, k3, k4 = jax.random.split(key, 4)
        scale = (2.0 / (fin + h * fout)) ** 0.5
        w = scale * jax.random.normal(k1, (fin, h * fout), jnp.float32)
        att_src = 0.5 * jax.random.normal(k2, (h, fout), jnp.float32)
        att_dst = 0.5 * jax.random.normal(k3, (h, fout), jnp.float32)
        bdim = h * fout if concat else fout
        bias = 0.1 * jax.random.normal(k4, (1, bdim), jnp.float32)
        return {"w": w, "att_src": att_src, "att_dst": att_dst, "bias": bias,
                "heads": h, "out_ch": fout}

    keys = jax.random.split(key, num_layers)
    params["convs"].append(make_conv(keys[0], in_ch, hidden_ch, heads, True))
    for i in range(num_layers - 2):
        params["convs"].append(
            make_conv(keys[i + 1], hidden_ch * heads, hidden_ch, heads, True))
    params["out"] = make_conv(keys[-1], hidden_ch * heads, out_ch, 1, False)
    return params


def build_adjacency_mask(key, n, num_random_edges):
    # ring edges + random edges + self-loops; mask[dst, src] = 1.0
    mask = jnp.zeros((n, n), jnp.float32)
    src_ring = jnp.arange(n)
    dst_ring = (src_ring + 1) % n
    mask = mask.at[dst_ring, src_ring].set(1.0)
    k1, k2 = jax.random.split(key)
    rs = jax.random.randint(k1, (num_random_edges,), 0, n)
    rd = jax.random.randint(k2, (num_random_edges,), 0, n)
    mask = mask.at[rd, rs].set(1.0)
    mask = mask.at[jnp.arange(n), jnp.arange(n)].set(1.0)  # self-loops (PyG default)
    return mask


if __name__ == "__main__":
    # 250 nodes -> n_pad=256; forcing 128x128 tiles gives a 2x2 (dst, src) grid,
    # exercising the online-softmax reduction path and row/column padding.
    N, IN_CH, HID_CH, OUT_CH, HEADS, NUM_LAYERS = 250, 16, 8, 4, 2, 3

    root = jax.random.PRNGKey(0)
    k_x, k_g, k_p = jax.random.split(root, 3)
    x = jax.random.normal(k_x, (N, IN_CH), jnp.float32)
    mask = build_adjacency_mask(k_g, N, num_random_edges=512)
    params = init_gat_params(k_p, IN_CH, HID_CH, OUT_CH, HEADS, NUM_LAYERS)

    out = gat_forward(x, mask, params, max_tile_q=128, max_tile_k=128)
    out = jax.block_until_ready(out)
    assert out.shape == (N, OUT_CH), out.shape
    assert bool(jnp.all(jnp.isfinite(out)))

    exp_dtype = _select_exp_dtype()
    ref = gat_forward_ref(x, mask, params, exp_dtype=exp_dtype)
    # bf16 exp + bf16 matmuls across 3 stacked layers legitimately diverge a few
    # percent from the (dense-softmax) reference; f32-exp parts stay tighter.
    tol = 2e-2 if exp_dtype == jnp.float32 else 8e-2
    err = float(jnp.max(jnp.abs(out - ref)))
    mean_err = float(jnp.mean(jnp.abs(out - ref)))
    assert jnp.allclose(out, ref, atol=tol, rtol=tol), f"max err {err}"
    assert mean_err < 1e-2, f"mean err {mean_err}"
    print("KERNEL_OK")
</pallas_src>

<mosaic_0001>
module attributes {stable_mosaic.version = 11 : i64} {
  func.func @_gat_proj_kernel(%arg0: i32, %arg1: memref<256x17xbf16, #tpu.memory_space<vmem>>, %arg2: memref<17x128xbf16, #tpu.memory_space<vmem>>, %arg3: memref<128x128xbf16, #tpu.memory_space<vmem>>, %arg4: memref<256x128xbf16, #tpu.memory_space<vmem>>, %arg5: memref<256x128xf32, #tpu.memory_space<vmem>>) attributes {dimension_semantics = [#tpu.dimension_semantics<parallel>], iteration_bounds = array<i64: 1>, scalar_prefetch = 0 : i64, scratch_operands = 0 : i64, tpu.core_type = #tpu.core_type<tc>, window_params = [{transform_indices = @transform_0, window_bounds = array<i64: 256, 17>}, {pipeline_mode = #tpu.pipeline_mode<synchronous>, transform_indices = @transform_1, window_bounds = array<i64: 17, 128>}, {pipeline_mode = #tpu.pipeline_mode<synchronous>, transform_indices = @transform_2, window_bounds = array<i64: 128, 128>}, {transform_indices = @transform_3, window_bounds = array<i64: 256, 128>}, {transform_indices = @transform_4, window_bounds = array<i64: 256, 128>}]} {
    %c0 = arith.constant 0 : index
    %c0_0 = arith.constant 0 : index
    %0 = vector.load %arg1[%c0, %c0_0] : memref<256x17xbf16, #tpu.memory_space<vmem>>, vector<256x17xbf16>
    %c0_1 = arith.constant 0 : index
    %c0_2 = arith.constant 0 : index
    %1 = vector.load %arg2[%c0_1, %c0_2] : memref<17x128xbf16, #tpu.memory_space<vmem>>, vector<17x128xbf16>
    %cst = arith.constant dense<0.000000e+00> : vector<256x128xf32>
    %2 = tpu.matmul %0, %1, %cst {dimension_numbers = #tpu.dot_dimension_numbers<[1], [0], [0], [1], [0, 0, 1, 1], [], []>} : vector<256x17xbf16>, vector<17x128xbf16>, vector<256x128xf32> -> vector<256x128xf32>
    %3 = arith.truncf %2 : vector<256x128xf32> to vector<256x128xbf16>
    %c0_3 = arith.constant 0 : index
    %c0_4 = arith.constant 0 : index
    %4 = vector.load %arg4[%c0_3, %c0_4] : memref<256x128xbf16, #tpu.memory_space<vmem>>, vector<256x128xbf16>
    tpu.vector_store %arg4[%c0_3, %c0_4], %3 {strides = array<i32>} : memref<256x128xbf16, #tpu.memory_space<vmem>>, vector<256x128xbf16>,
    %c0_5 = arith.constant 0 : index
    %c0_6 = arith.constant 0 : index
    %5 = vector.load %arg3[%c0_5, %c0_6] : memref<128x128xbf16, #tpu.memory_space<vmem>>, vector<128x128xbf16>
    %cst_7 = arith.constant dense<0.000000e+00> : vector<256x128xf32>
    %6 = tpu.matmul %3, %5, %cst_7 {dimension_numbers = #tpu.dot_dimension_numbers<[1], [0], [0], [1], [0, 0, 1, 1], [], []>} : vector<256x128xbf16>, vector<128x128xbf16>, vector<256x128xf32> -> vector<256x128xf32>
    %c0_8 = arith.constant 0 : index
    %c0_9 = arith.constant 0 : index
    %7 = vector.load %arg5[%c0_8, %c0_9] : memref<256x128xf32, #tpu.memory_space<vmem>>, vector<256x128xf32>
    tpu.vector_store %arg5[%c0_8, %c0_9], %6 {strides = array<i32>} : memref<256x128xf32, #tpu.memory_space<vmem>>, vector<256x128xf32>,
    return
  }
  func.func @transform_0(%arg0: i32) -> (i32, i32) {
    %c0_i32 = arith.constant 0 : i32
    %c0_i32_0 = arith.constant 0 : i32
    return %arg0, %c0_i32 : i32, i32
  }
  func.func @transform_1(%arg0: i32) -> (i32, i32) {
    %c0_i32 = arith.constant 0 : i32
    %c0_i32_0 = arith.constant 0 : i32
    %c0_i32_1 = arith.constant 0 : i32
    return %c0_i32, %c0_i32_0 : i32, i32
  }
  func.func @transform_2(%arg0: i32) -> (i32, i32) {
    %c0_i32 = arith.constant 0 : i32
    %c0_i32_0 = arith.constant 0 : i32
    %c0_i32_1 = arith.constant 0 : i32
    return %c0_i32, %c0_i32_0 : i32, i32
  }
  func.func @transform_3(%arg0: i32) -> (i32, i32) {
    %c0_i32 = arith.constant 0 : i32
    %c0_i32_0 = arith.constant 0 : i32
    return %arg0, %c0_i32 : i32, i32
  }
  func.func @transform_4(%arg0: i32) -> (i32, i32) {
    %c0_i32 = arith.constant 0 : i32
    %c0_i32_0 = arith.constant 0 : i32
    return %arg0, %c0_i32 : i32, i32
  }
}

</mosaic_0001>

<llo_original>
// kernel: tpu_custom_call.1
$region0: #{tpu_custom_call.1}
  #allocation0 [shape = 'u32[]', space=smem, size = 0x4, offset = 0x4, fixed_abs, tag = 'smem constant byte address 0x4 - core index']
  #allocation1 [shape = 'u32[144,128]{1,0:T(1,128)}', space=vmem, size = 0x12000, scoped, tag = 'internal scratch']
  %s0 = inlined_call_operand.vmem [shape: bf16[256,17], index: 0, kind: input, shape index: {}]
  %s1 = inlined_call_operand.vmem [shape: bf16[17,128], index: 1, kind: input, shape index: {}]
  %s2 = inlined_call_operand.vmem [shape: bf16[128,128], index: 2, kind: input, shape index: {}]
  %s3 = inlined_call_operand.hbm [shape: bf16[256,128], index: 3, kind: output, shape index: {0}]
  %s4 = inlined_call_operand.hbm [shape: f32[256,128], index: 4, kind: output, shape index: {1}]
  %5 = xla_tuple %s3, %s4
  %s6 = sld [smem:[#allocation0]]
  $region30: #{tpu_custom_call.1} parent=0
    _
  %s8 = ssub.s32 1, %s6
  %s9 = scalar_select 0, %s8, %s6
  $region1: #{tpu_custom_call.1} parent=0
    #allocation2 [shape = 'u8[65536]{0}', space=vmem, size = 0x10000, scoped, tag = 'output window, operand 0, single buffered']
    #allocation3 [shape = 's32[1]{0}', space=sflag, size = 0x4, scoped, tag = 'scoped memory for tpu_custom_call.1']
    #allocation4 [shape = 'u8[131072]{0}', space=vmem, size = 0x20000, scoped, tag = 'output window, operand 1, single buffered']
    #allocation5 [shape = 's32[1]{0}', space=sflag, size = 0x4, scoped, tag = 'scoped memory for tpu_custom_call.1']
    %10 = vsyncpa [#allocation3], 0
    %11 = vsyncpa [#allocation5], 0
    // Predicated region
    $region2: #{tpu_custom_call.1} parent=1 // pred_check
      _
    $region3: #{tpu_custom_call.1} parent=1 // pred_check_branch
      %13 = sbr.rel (0) target = $region5
    $region4: #{tpu_custom_call.1} parent=1 // pred_region
      _
    $region5: #{tpu_custom_call.1} parent=1 // pred_fallthru
      _
    // Predicated region
    $region6: #{tpu_custom_call.1} parent=1 // pred_check
      _
    $region7: #{tpu_custom_call.1} parent=1 // pred_check_branch
      %15 = sbr.rel (0) target = $region9
    $region8: #{tpu_custom_call.1} parent=1 // pred_region
      _
    $region9: #{tpu_custom_call.1} parent=1 // pred_fallthru
      _
    // Predicated region
    $region10: #{tpu_custom_call.1} parent=1 // pred_check
      _
    $region11: #{tpu_custom_call.1} parent=1 // pred_check_branch
      %17 = sbr.rel (0) target = $region13
    $region12: #{tpu_custom_call.1} parent=1 // pred_region
      _
    $region13: #{tpu_custom_call.1} parent=1 // pred_fallthru
      _
    %v19 = vld [vmem:[%s0] sm:$0xf]
    %v20 = vld [vmem:[%s0 + $0x4] sm:$0xf]
    %v21 = vld [vmem:[%s0 + $0x8] sm:$0xf]
    %v22 = vld [vmem:[%s0 + $0xc] sm:$0xf]
    %v23 = vld [vmem:[%s0 + $0x10] sm:$0xf]
    %v24 = vld [vmem:[%s0 + $0x14] sm:$0xf]
    %v25 = vld [vmem:[%s0 + $0x18] sm:$0xf]
    %v26 = vld [vmem:[%s0 + $0x1c] sm:$0xf]
    %v27 = vld [vmem:[%s0 + $0x20] sm:$0xf]
    %v28 = vld [vmem:[%s0 + $0x24] sm:$0xf]
    %v29 = vld [vmem:[%s0 + $0x28] sm:$0xf]
    %v30 = vld [vmem:[%s0 + $0x2c] sm:$0xf]
    %v31 = vld [vmem:[%s0 + $0x30] sm:$0xf]
    %v32 = vld [vmem:[%s0 + $0x34] sm:$0xf]
    %v33 = vld [vmem:[%s0 + $0x38] sm:$0xf]
    %v34 = vld [vmem:[%s0 + $0x3c] sm:$0xf]
    %v35 = vld [vmem:[%s0 + $0x40] sm:$0xf]
    %v36 = vld [vmem:[%s0 + $0x44] sm:$0xf]
    %v37 = vld [vmem:[%s0 + $0x48] sm:$0xf]
    %v38 = vld [vmem:[%s0 + $0x4c] sm:$0xf]
    %v39 = vld [vmem:[%s0 + $0x50] sm:$0xf]
    %v40 = vld [vmem:[%s0 + $0x54] sm:$0xf]
    %v41 = vld [vmem:[%s0 + $0x58] sm:$0xf]
    %v42 = vld [vmem:[%s0 + $0x5c] sm:$0xf]
    %v43 = vld [vmem:[%s0 + $0x60] sm:$0xf]
    %v44 = vld [vmem:[%s0 + $0x64] sm:$0xf]
    %v45 = vld [vmem:[%s0 + $0x68] sm:$0xf]
    %v46 = vld [vmem:[%s0 + $0x6c] sm:$0xf]
    %v47 = vld [vmem:[%s0 + $0x70] sm:$0xf]
    %v48 = vld [vmem:[%s0 + $0x74] sm:$0xf]
    %v49 = vld [vmem:[%s0 + $0x78] sm:$0xf]
    %v50 = vld [vmem:[%s0 + $0x7c] sm:$0xf]
    %v51 = vld [vmem:[%s1] sm:$0xf]
    %v52 = vld [vmem:[%s1 + $0x4] sm:$0xf]
    %v53 = vld [vmem:[%s1 + $0x8] sm:$0x1]
    %v86 = vunpack.c.l.b16 %v19
    %v87 = vunpack.c.l.b16 %v20
    %v88 = vunpack.c.l.b16 %v21
    %v89 = vunpack.c.l.b16 %v22
    %v90 = vunpack.c.l.b16 %v23
    %v91 = vunpack.c.l.b16 %v24
    %v92 = vunpack.c.l.b16 %v25
    %v93 = vunpack.c.l.b16 %v26
    %v94 = vunpack.c.l.b16 %v27
    %v95 = vunpack.c.l.b16 %v28
    %v96 = vunpack.c.l.b16 %v29
    %v97 = vunpack.c.l.b16 %v30
    %v98 = vunpack.c.l.b16 %v31
    %v99 = vunpack.c.l.b16 %v32
    %v100 = vunpack.c.l.b16 %v33
    %v101 = vunpack.c.l.b16 %v34
    %v102 = vunpack.c.l.b16 %v35
    %v103 = vunpack.c.l.b16 %v36
    %v104 = vunpack.c.l.b16 %v37
    %v105 = vunpack.c.l.b16 %v38
    %v106 = vunpack.c.l.b16 %v39
    %v107 = vunpack.c.l.b16 %v40
    %v108 = vunpack.c.l.b16 %v41
    %v109 = vunpack.c.l.b16 %v42
    %v110 = vunpack.c.l.b16 %v43
    %v111 = vunpack.c.l.b16 %v44
    %v112 = vunpack.c.l.b16 %v45
    %v113 = vunpack.c.l.b16 %v46
    %v114 = vunpack.c.l.b16 %v47
    %v115 = vunpack.c.l.b16 %v48
    %v116 = vunpack.c.l.b16 %v49
    %v117 = vunpack.c.l.b16 %v50
    %v118 = vpack.c.b16 %v87, %v86
    %v119 = vpack.c.b16 %v89, %v88
    %v120 = vpack.c.b16 %v91, %v90
    %v121 = vpack.c.b16 %v93, %v92
    %v122 = vpack.c.b16 %v95, %v94
    %v123 = vpack.c.b16 %v97, %v96
    %v124 = vpack.c.b16 %v99, %v98
    %v125 = vpack.c.b16 %v101, %v100
    %v126 = vpack.c.b16 %v103, %v102
    %v127 = vpack.c.b16 %v105, %v104
    %v128 = vpack.c.b16 %v107, %v106
    %v129 = vpack.c.b16 %v109, %v108
    %v130 = vpack.c.b16 %v111, %v110
    %v131 = vpack.c.b16 %v113, %v112
    %v132 = vpack.c.b16 %v115, %v114
    %v133 = vpack.c.b16 %v117, %v116
    %v137 = vunpack.c.l.b16 %v51
    %v138 = vunpack.c.l.b16 %v52
    %v139 = vunpack.c.l.b16 %v53
    %v140 = vpack.c.b16 %v138, %v137
    %v141 = vpack.c.b16 %v139, %v139
    %vm143 = vcmask 138240
    %v145 = vsel %vm143, %v118, 0
    %v148 = vsel %vm143, %v119, 0
    %v151 = vsel %vm143, %v120, 0
    %v154 = vsel %vm143, %v121, 0
    %v157 = vsel %vm143, %v122, 0
    %v160 = vsel %vm143, %v123, 0
    %v163 = vsel %vm143, %v124, 0
    %v166 = vsel %vm143, %v125, 0
    %v169 = vsel %vm143, %v126, 0
    %v172 = vsel %vm143, %v127, 0
    %v175 = vsel %vm143, %v128, 0
    %v178 = vsel %vm143, %v129, 0
    %v181 = vsel %vm143, %v130, 0
    %v184 = vsel %vm143, %v131, 0
    %v187 = vsel %vm143, %v132, 0
    %v190 = vsel %vm143, %v133, 0
    %vm192 = vcmask 1040384
    %v193 = vsel 0, 4294967295, 65535
    %v194 = vsel %vm192, %v193, 0
    %v196 = vand.u32 %v141, %v194
    %198 = vmatprep.subr.bf16.mxu0 0
    %199 = vmatpush1.bf16.msra.mxu0 %v140
    %200 = vmatprep.subr.bf16.mxu0 0
    %201 = vmatpush1.bf16.msra.mxu0 %v196
    %202 = vmatprep.subr.bf16.mxu0 0
    %203 = vmatpush1.bf16.msra.mxu0 0
    %204 = vmatprep.subr.bf16.mxu0 0
    %205 = vmatpush1.bf16.msra.mxu0 0
    %206 = vmatprep.subr.bf16.mxu0 0
    %207 = vmatpush1.bf16.msra.mxu0 0
    %208 = vmatprep.subr.bf16.mxu0 0
    %209 = vmatpush1.bf16.msra.mxu0 0
    %210 = vmatprep.subr.bf16.mxu0 0
    %211 = vmatpush1.bf16.msra.mxu0 0
    %212 = vmatprep.subr.bf16.mxu0 0
    %213 = vmatpush1.bf16.msra.mxu0 0
    %214 = vmatprep.subr.bf16.mxu0 0
    %215 = vmatpush1.bf16.msra.mxu0 0
    %216 = vmatprep.subr.bf16.mxu0 0
    %217 = vmatpush1.bf16.msra.mxu0 0
    %218 = vmatprep.subr.bf16.mxu0 0
    %219 = vmatpush1.bf16.msra.mxu0 0
    %220 = vmatprep.subr.bf16.mxu0 0
    %221 = vmatpush1.bf16.msra.mxu0 0
    %222 = vmatprep.subr.bf16.mxu0 0
    %223 = vmatpush1.bf16.msra.mxu0 0
    %224 = vmatprep.subr.bf16.mxu0 0
    %225 = vmatpush1.bf16.msra.mxu0 0
    %226 = vmatprep.subr.bf16.mxu0 0
    %227 = vmatpush1.bf16.msra.mxu0 0
    %228 = vmatprep.subr.bf16.mxu0 0
    %229 = vmatpush1.bf16.msra.mxu0 0
    %230 = vmatprep.mubr.bf16.mxu0 0
    %231 = vmatmul.mubr.bf16.gmra.mrb[0].mxu0 %v145
    %v232 = vpop.f32.mrb[0].mxu0
    %v233 = vadd.f32 0.0, %v232
    %v234 = vpop.f32.mrb[0].mxu0
    %v235 = vpop.f32.mrb[0].mxu0
    %v236 = vadd.f32 0.0, %v235
    %v237 = vpop.f32.mrb[0].mxu0
    %238 = vmatprep.mubr.bf16.mxu0 0
    %239 = vmatmul.mubr.bf16.gmra.mrb[0].mxu0 %v148
    %v240 = vpop.f32.mrb[0].mxu0
    %v241 = vadd.f32 0.0, %v240
    %v242 = vpop.f32.mrb[0].mxu0
    %v243 = vpop.f32.mrb[0].mxu0
    %v244 = vadd.f32 0.0, %v243
    %v245 = vpop.f32.mrb[0].mxu0
    %246 = vmatprep.mubr.bf16.mxu0 0
    %247 = vmatmul.mubr.bf16.gmra.mrb[0].mxu0 %v151
    %v248 = vpop.f32.mrb[0].mxu0
    %v249 = vadd.f32 0.0, %v248
    %v250 = vpop.f32.mrb[0].mxu0
    %v251 = vpop.f32.mrb[0].mxu0
    %v252 = vadd.f32 0.0, %v251
    %v253 = vpop.f32.mrb[0].mxu0
    %254 = vmatprep.mubr.bf16.mxu0 0
    %255 = vmatmul.mubr.bf16.gmra.mrb[0].mxu0 %v154
    %v256 = vpop.f32.mrb[0].mxu0
    %v257 = vadd.f32 0.0, %v256
    %v258 = vpop.f32.mrb[0].mxu0
    %v259 = vpop.f32.mrb[0].mxu0
    %v260 = vadd.f32 0.0, %v259
    %v261 = vpop.f32.mrb[0].mxu0
    %262 = vmatprep.mubr.bf16.mxu0 0
    %263 = vmatmul.mubr.bf16.gmra.mrb[0].mxu0 %v157
    %v264 = vpop.f32.mrb[0].mxu0
    %v265 = vadd.f32 0.0, %v264
    %v266 = vpop.f32.mrb[0].mxu0
    %v267 = vpop.f32.mrb[0].mxu0
    %v268 = vadd.f32 0.0, %v267
    %v269 = vpop.f32.mrb[0].mxu0
    %270 = vmatprep.mubr.bf16.mxu0 0
    %271 = vmatmul.mubr.bf16.gmra.mrb[0].mxu0 %v160
    %v272 = vpop.f32.mrb[0].mxu0
    %v273 = vadd.f32 0.0, %v272
    %v274 = vpop.f32.mrb[0].mxu0
    %v275 = vpop.f32.mrb[0].mxu0
    %v276 = vadd.f32 0.0, %v275
    %v277 = vpop.f32.mrb[0].mxu0
    %278 = vmatprep.mubr.bf16.mxu0 0
    %279 = vmatmul.mubr.bf16.gmra.mrb[0].mxu0 %v163
    %v280 = vpop.f32.mrb[0].mxu0
    %v281 = vadd.f32 0.0, %v280
    %v282 = vpop.f32.mrb[0].mxu0
    %v283 = vpop.f32.mrb[0].mxu0
    %v284 = vadd.f32 0.0, %v283
    %v285 = vpop.f32.mrb[0].mxu0
    %286 = vmatprep.mubr.bf16.mxu0 0
    %287 = vmatmul.mubr.bf16.gmra.mrb[0].mxu0 %v166
    %v288 = vpop.f32.mrb[0].mxu0
    %v289 = vadd.f32 0.0, %v288
    %v290 = vpop.f32.mrb[0].mxu0
    %v291 = vpop.f32.mrb[0].mxu0
    %v292 = vadd.f32 0.0, %v291
    %v293 = vpop.f32.mrb[0].mxu0
    %294 = vmatprep.mubr.bf16.mxu0 0
    %295 = vmatmul.mubr.bf16.gmra.mrb[0].mxu0 %v169
    %v296 = vpop.f32.mrb[0].mxu0
    %v297 = vadd.f32 0.0, %v296
    %v298 = vpop.f32.mrb[0].mxu0
    %v299 = vpop.f32.mrb[0].mxu0
    %v300 = vadd.f32 0.0, %v299
    %v301 = vpop.f32.mrb[0].mxu0
    %302 = vmatprep.mubr.bf16.mxu0 0
    %303 = vmatmul.mubr.bf16.gmra.mrb[0].mxu0 %v172
    %v304 = vpop.f32.mrb[0].mxu0
    %v305 = vadd.f32 0.0, %v304
    %v306 = vpop.f32.mrb[0].mxu0
    %v307 = vpop.f32.mrb[0].mxu0
    %v308 = vadd.f32 0.0, %v307
    %v309 = vpop.f32.mrb[0].mxu0
    %310 = vmatprep.mubr.bf16.mxu0 0
    %311 = vmatmul.mubr.bf16.gmra.mrb[0].mxu0 %v175
    %v312 = vpop.f32.mrb[0].mxu0
    %v313 = vadd.f32 0.0, %v312
    %v314 = vpop.f32.mrb[0].mxu0
    %v315 = vpop.f32.mrb[0].mxu0
    %v316 = vadd.f32 0.0, %v315
    %v317 = vpop.f32.mrb[0].mxu0
    %318 = vmatprep.mubr.bf16.mxu0 0
    %319 = vmatmul.mubr.bf16.gmra.mrb[0].mxu0 %v178
    %v320 = vpop.f32.mrb[0].mxu0
    %v321 = vadd.f32 0.0, %v320
    %v322 = vpop.f32.mrb[0].mxu0
    %v323 = vpop.f32.mrb[0].mxu0
    %v324 = vadd.f32 0.0, %v323
    %v325 = vpop.f32.mrb[0].mxu0
    %326 = vmatprep.mubr.bf16.mxu0 0
    %327 = vmatmul.mubr.bf16.gmra.mrb[0].mxu0 %v181
    %v328 = vpop.f32.mrb[0].mxu0
    %v329 = vadd.f32 0.0, %v328
    %v330 = vpop.f32.mrb[0].mxu0
    %v331 = vpop.f32.mrb[0].mxu0
    %v332 = vadd.f32 0.0, %v331
    %v333 = vpop.f32.mrb[0].mxu0
    %334 = vmatprep.mubr.bf16.mxu0 0
    %335 = vmatmul.mubr.bf16.gmra.mrb[0].mxu0 %v184
    %v336 = vpop.f32.mrb[0].mxu0
    %v337 = vadd.f32 0.0, %v336
    %v338 = vpop.f32.mrb[0].mxu0
    %v339 = vpop.f32.mrb[0].mxu0
    %v340 = vadd.f32 0.0, %v339
    %v341 = vpop.f32.mrb[0].mxu0
    %342 = vmatprep.mubr.bf16.mxu0 0
    %343 = vmatmul.mubr.bf16.gmra.mrb[0].mxu0 %v187
    %v344 = vpop.f32.mrb[0].mxu0
    %v345 = vadd.f32 0.0, %v344
    %v346 = vpop.f32.mrb[0].mxu0
    %v347 = vpop.f32.mrb[0].mxu0
    %v348 = vadd.f32 0.0, %v347
    %v349 = vpop.f32.mrb[0].mxu0
    %350 = vmatprep.mubr.bf16.mxu0 0
    %351 = vmatmul.mubr.bf16.gmra.mrb[0].mxu0 %v190
    %v352 = vpop.f32.mrb[0].mxu0
    %v353 = vadd.f32 0.0, %v352
    %v354 = vpop.f32.mrb[0].mxu0
    %v355 = vpop.f32.mrb[0].mxu0
    %v356 = vadd.f32 0.0, %v355
    %v357 = vpop.f32.mrb[0].mxu0
    %358 = vdwg.mxu0
    %v359 = vpack.c.bf16 %v236, %v233
    %v360 = vpack.c.bf16 %v244, %v241
    %v361 = vpack.c.bf16 %v252, %v249
    %v362 = vpack.c.bf16 %v260, %v257
    %v363 = vpack.c.bf16 %v268, %v265
    %v364 = vpack.c.bf16 %v276, %v273
    %v365 = vpack.c.bf16 %v284, %v281
    %v366 = vpack.c.bf16 %v292, %v289
    %v367 = vpack.c.bf16 %v300, %v297
    %v368 = vpack.c.bf16 %v308, %v305
    %v369 = vpack.c.bf16 %v316, %v313
    %v370 = vpack.c.bf16 %v324, %v321
    %v371 = vpack.c.bf16 %v332, %v329
    %v372 = vpack.c.bf16 %v340, %v337
    %v373 = vpack.c.bf16 %v348, %v345
    %v374 = vpack.c.bf16 %v356, %v353
    %v391 = vunpack.c.l.b16 %v359
    %v392 = vunpack.c.h.b16 %v359
    %v393 = vunpack.c.l.b16 %v360
    %v394 = vunpack.c.h.b16 %v360
    %v395 = vunpack.c.l.b16 %v361
    %v396 = vunpack.c.h.b16 %v361
    %v397 = vunpack.c.l.b16 %v362
    %v398 = vunpack.c.h.b16 %v362
    %v399 = vunpack.c.l.b16 %v363
    %v400 = vunpack.c.h.b16 %v363
    %v401 = vunpack.c.l.b16 %v364
    %v402 = vunpack.c.h.b16 %v364
    %v403 = vunpack.c.l.b16 %v365
    %v404 = vunpack.c.h.b16 %v365
    %v405 = vunpack.c.l.b16 %v366
    %v406 = vunpack.c.h.b16 %v366
    %v407 = vunpack.c.l.b16 %v367
    %v408 = vunpack.c.h.b16 %v367
    %v409 = vunpack.c.l.b16 %v368
    %v410 = vunpack.c.h.b16 %v368
    %v411 = vunpack.c.l.b16 %v369
    %v412 = vunpack.c.h.b16 %v369
    %v413 = vunpack.c.l.b16 %v370
    %v414 = vunpack.c.h.b16 %v370
    %v415 = vunpack.c.l.b16 %v371
    %v416 = vunpack.c.h.b16 %v371
    %v417 = vunpack.c.l.b16 %v372
    %v418 = vunpack.c.h.b16 %v372
    %v419 = vunpack.c.l.b16 %v373
    %v420 = vunpack.c.h.b16 %v373
    %v421 = vunpack.c.l.b16 %v374
    %v422 = vunpack.c.h.b16 %v374
    %v423 = vpack.c.b16 %v391, %v391
    %v424 = vpack.c.b16 %v392, %v392
    %v425 = vpack.c.b16 %v393, %v393
    %v426 = vpack.c.b16 %v394, %v394
    %v427 = vpack.c.b16 %v395, %v395
    %v428 = vpack.c.b16 %v396, %v396
    %v429 = vpack.c.b16 %v397, %v397
    %v430 = vpack.c.b16 %v398, %v398
    %v431 = vpack.c.b16 %v399, %v399
    %v432 = vpack.c.b16 %v400, %v400
    %v433 = vpack.c.b16 %v401, %v401
    %v434 = vpack.c.b16 %v402, %v402
    %v435 = vpack.c.b16 %v403, %v403
    %v436 = vpack.c.b16 %v404, %v404
    %v437 = vpack.c.b16 %v405, %v405
    %v438 = vpack.c.b16 %v406, %v406
    %v439 = vpack.c.b16 %v407, %v407
    %v440 = vpack.c.b16 %v408, %v408
    %v441 = vpack.c.b16 %v409, %v409
    %v442 = vpack.c.b16 %v410, %v410
    %v443 = vpack.c.b16 %v411, %v411
    %v444 = vpack.c.b16 %v412, %v412
    %v445 = vpack.c.b16 %v413, %v413
    %v446 = vpack.c.b16 %v414, %v414
    %v447 = vpack.c.b16 %v415, %v415
    %v448 = vpack.c.b16 %v416, %v416
    %v449 = vpack.c.b16 %v417, %v417
    %v450 = vpack.c.b16 %v418, %v418
    %v451 = vpack.c.b16 %v419, %v419
    %v452 = vpack.c.b16 %v420, %v420
    %v453 = vpack.c.b16 %v421, %v421
    %v454 = vpack.c.b16 %v422, %v422
    %487 = vst [vmem:[#allocation2] sm:$0xf] %v423
    %488 = vst [vmem:[#allocation2 + $0x4] sm:$0xf] %v424
    %489 = vst [vmem:[#allocation2 + $0x8] sm:$0xf] %v425
    %490 = vst [vmem:[#allocation2 + $0xc] sm:$0xf] %v426
    %491 = vst [vmem:[#allocation2 + $0x10] sm:$0xf] %v427
    %492 = vst [vmem:[#allocation2 + $0x14] sm:$0xf] %v428
    %493 = vst [vmem:[#allocation2 + $0x18] sm:$0xf] %v429
    %494 = vst [vmem:[#allocation2 + $0x1c] sm:$0xf] %v430
    %495 = vst [vmem:[#allocation2 + $0x20] sm:$0xf] %v431
    %496 = vst [vmem:[#allocation2 + $0x24] sm:$0xf] %v432
    %497 = vst [vmem:[#allocation2 + $0x28] sm:$0xf] %v433
    %498 = vst [vmem:[#allocation2 + $0x2c] sm:$0xf] %v434
    %499 = vst [vmem:[#allocation2 + $0x30] sm:$0xf] %v435
    %500 = vst [vmem:[#allocation2 + $0x34] sm:$0xf] %v436
    %501 = vst [vmem:[#allocation2 + $0x38] sm:$0xf] %v437
    %502 = vst [vmem:[#allocation2 + $0x3c] sm:$0xf] %v438
    %503 = vst [vmem:[#allocation2 + $0x40] sm:$0xf] %v439
    %504 = vst [vmem:[#allocation2 + $0x44] sm:$0xf] %v440
    %505 = vst [vmem:[#allocation2 + $0x48] sm:$0xf] %v441
    %506 = vst [vmem:[#allocation2 + $0x4c] sm:$0xf] %v442
    %507 = vst [vmem:[#allocation2 + $0x50] sm:$0xf] %v443
    %508 = vst [vmem:[#allocation2 + $0x54] sm:$0xf] %v444
    %509 = vst [vmem:[#allocation2 + $0x58] sm:$0xf] %v445
    %510 = vst [vmem:[#allocation2 + $0x5c] sm:$0xf] %v446
    %511 = vst [vmem:[#allocation2 + $0x60] sm:$0xf] %v447
    %512 = vst [vmem:[#allocation2 + $0x64] sm:$0xf] %v448
    %513 = vst [vmem:[#allocation2 + $0x68] sm:$0xf] %v449
    %514 = vst [vmem:[#allocation2 + $0x6c] sm:$0xf] %v450
    %515 = vst [vmem:[#allocation2 + $0x70] sm:$0xf] %v451
    %516 = vst [vmem:[#allocation2 + $0x74] sm:$0xf] %v452
    %517 = vst [vmem:[#allocation2 + $0x78] sm:$0xf] %v453
    %518 = vst [vmem:[#allocation2 + $0x7c] sm:$0xf] %v454
    %v519 = vld [vmem:[%s2] sm:$0xf]
    %v520 = vld [vmem:[%s2 + $0x4] sm:$0xf]
    %v521 = vld [vmem:[%s2 + $0x8] sm:$0xf]
    %v522 = vld [vmem:[%s2 + $0xc] sm:$0xf]
    %v523 = vld [vmem:[%s2 + $0x10] sm:$0xf]
    %v524 = vld [vmem:[%s2 + $0x14] sm:$0xf]
    %v525 = vld [vmem:[%s2 + $0x18] sm:$0xf]
    %v526 = vld [vmem:[%s2 + $0x1c] sm:$0xf]
    %v527 = vld [vmem:[%s2 + $0x20] sm:$0xf]
    %v528 = vld [vmem:[%s2 + $0x24] sm:$0xf]
    %v529 = vld [vmem:[%s2 + $0x28] sm:$0xf]
    %v530 = vld [vmem:[%s2 + $0x2c] sm:$0xf]
    %v531 = vld [vmem:[%s2 + $0x30] sm:$0xf]
    %v532 = vld [vmem:[%s2 + $0x34] sm:$0xf]
    %v533 = vld [vmem:[%s2 + $0x38] sm:$0xf]
    %v534 = vld [vmem:[%s2 + $0x3c] sm:$0xf]
    %v551 = vunpack.c.l.b16 %v519
    %v552 = vunpack.c.l.b16 %v520
    %v553 = vunpack.c.l.b16 %v521
    %v554 = vunpack.c.l.b16 %v522
    %v555 = vunpack.c.l.b16 %v523
    %v556 = vunpack.c.l.b16 %v524
    %v557 = vunpack.c.l.b16 %v525
    %v558 = vunpack.c.l.b16 %v526
    %v559 = vunpack.c.l.b16 %v527
    %v560 = vunpack.c.l.b16 %v528
    %v561 = vunpack.c.l.b16 %v529
    %v562 = vunpack.c.l.b16 %v530
    %v563 = vunpack.c.l.b16 %v531
    %v564 = vunpack.c.l.b16 %v532
    %v565 = vunpack.c.l.b16 %v533
    %v566 = vunpack.c.l.b16 %v534
    %v567 = vpack.c.b16 %v552, %v551
    %v568 = vpack.c.b16 %v554, %v553
    %v569 = vpack.c.b16 %v556, %v555
    %v570 = vpack.c.b16 %v558, %v557
    %v571 = vpack.c.b16 %v560, %v559
    %v572 = vpack.c.b16 %v562, %v561
    %v573 = vpack.c.b16 %v564, %v563
    %v574 = vpack.c.b16 %v566, %v565
    %583 = vmatprep.subr.bf16.mxu0 0
    %584 = vmatpush1.bf16.msra.mxu0 %v567
    %585 = vmatprep.subr.bf16.mxu0 0
    %586 = vmatpush1.bf16.msra.mxu0 %v568
    %587 = vmatprep.subr.bf16.mxu0 0
    %588 = vmatpush1.bf16.msra.mxu0 %v569
    %589 = vmatprep.subr.bf16.mxu0 0
    %590 = vmatpush1.bf16.msra.mxu0 %v570
    %591 = vmatprep.subr.bf16.mxu0 0
    %592 = vmatpush1.bf16.msra.mxu0 %v571
    %593 = vmatprep.subr.bf16.mxu0 0
    %594 = vmatpush1.bf16.msra.mxu0 %v572
    %595 = vmatprep.subr.bf16.mxu0 0
    %596 = vmatpush1.bf16.msra.mxu0 %v573
    %597 = vmatprep.subr.bf16.mxu0 0
    %598 = vmatpush1.bf16.msra.mxu0 %v574
    %599 = vmatprep.subr.bf16.mxu0 0
    %600 = vmatpush1.bf16.msra.mxu0 0
    %601 = vmatprep.subr.bf16.mxu0 0
    %602 = vmatpush1.bf16.msra.mxu0 0
    %603 = vmatprep.subr.bf16.mxu0 0
    %604 = vmatpush1.bf16.msra.mxu0 0
    %605 = vmatprep.subr.bf16.mxu0 0
    %606 = vmatpush1.bf16.msra.mxu0 0
    %607 = vmatprep.subr.bf16.mxu0 0
    %608 = vmatpush1.bf16.msra.mxu0 0
    %609 = vmatprep.subr.bf16.mxu0 0
    %610 = vmatpush1.bf16.msra.mxu0 0
    %611 = vmatprep.subr.bf16.mxu0 0
    %612 = vmatpush1.bf16.msra.mxu0 0
    %613 = vmatprep.subr.bf16.mxu0 0
    %614 = vmatpush1.bf16.msra.mxu0 0
    %615 = vmatprep.mubr.bf16.mxu0 0
    %616 = vmatmul.mubr.bf16.gmra.mrb[0].mxu0 %v359
    %v617 = vpop.f32.mrb[0].mxu0
    %v618 = vadd.f32 0.0, %v617
    %v619 = vpop.f32.mrb[0].mxu0
    %v620 = vpop.f32.mrb[0].mxu0
    %v621 = vadd.f32 0.0, %v620
    %v622 = vpop.f32.mrb[0].mxu0
    %623 = vmatprep.mubr.bf16.mxu0 0
    %624 = vmatmul.mubr.bf16.gmra.mrb[0].mxu0 %v360
    %v625 = vpop.f32.mrb[0].mxu0
    %v626 = vadd.f32 0.0, %v625
    %v627 = vpop.f32.mrb[0].mxu0
    %v628 = vpop.f32.mrb[0].mxu0
    %v629 = vadd.f32 0.0, %v628
    %v630 = vpop.f32.mrb[0].mxu0
    %631 = vmatprep.mubr.bf16.mxu0 0
    %632 = vmatmul.mubr.bf16.gmra.mrb[0].mxu0 %v361
    %v633 = vpop.f32.mrb[0].mxu0
    %v634 = vadd.f32 0.0, %v633
    %v635 = vpop.f32.mrb[0].mxu0
    %v636 = vpop.f32.mrb[0].mxu0
    %v637 = vadd.f32 0.0, %v636
    %v638 = vpop.f32.mrb[0].mxu0
    %639 = vmatprep.mubr.bf16.mxu0 0
    %640 = vmatmul.mubr.bf16.gmra.mrb[0].mxu0 %v362
    %v641 = vpop.f32.mrb[0].mxu0
    %v642 = vadd.f32 0.0, %v641
    %v643 = vpop.f32.mrb[0].mxu0
    %v644 = vpop.f32.mrb[0].mxu0
    %v645 = vadd.f32 0.0, %v644
    %v646 = vpop.f32.mrb[0].mxu0
    %647 = vmatprep.mubr.bf16.mxu0 0
    %648 = vmatmul.mubr.bf16.gmra.mrb[0].mxu0 %v363
    %v649 = vpop.f32.mrb[0].mxu0
    %v650 = vadd.f32 0.0, %v649
    %v651 = vpop.f32.mrb[0].mxu0
    %v652 = vpop.f32.mrb[0].mxu0
    %v653 = vadd.f32 0.0, %v652
    %v654 = vpop.f32.mrb[0].mxu0
    %655 = vmatprep.mubr.bf16.mxu0 0
    %656 = vmatmul.mubr.bf16.gmra.mrb[0].mxu0 %v364
    %v657 = vpop.f32.mrb[0].mxu0
    %v658 = vadd.f32 0.0, %v657
    %v659 = vpop.f32.mrb[0].mxu0
    %v660 = vpop.f32.mrb[0].mxu0
    %v661 = vadd.f32 0.0, %v660
    %v662 = vpop.f32.mrb[0].mxu0
    %663 = vmatprep.mubr.bf16.mxu0 0
    %664 = vmatmul.mubr.bf16.gmra.mrb[0].mxu0 %v365
    %v665 = vpop.f32.mrb[0].mxu0
    %v666 = vadd.f32 0.0, %v665
    %v667 = vpop.f32.mrb[0].mxu0
    %v668 = vpop.f32.mrb[0].mxu0
    %v669 = vadd.f32 0.0, %v668
    %v670 = vpop.f32.mrb[0].mxu0
    %671 = vmatprep.mubr.bf16.mxu0 0
    %672 = vmatmul.mubr.bf16.gmra.mrb[0].mxu0 %v366
    %v673 = vpop.f32.mrb[0].mxu0
    %v674 = vadd.f32 0.0, %v673
    %v675 = vpop.f32.mrb[0].mxu0
    %v676 = vpop.f32.mrb[0].mxu0
    %v677 = vadd.f32 0.0, %v676
    %v678 = vpop.f32.mrb[0].mxu0
    %679 = vmatprep.mubr.bf16.mxu0 0
    %680 = vmatmul.mubr.bf16.gmra.mrb[0].mxu0 %v367
    %v681 = vpop.f32.mrb[0].mxu0
    %v682 = vadd.f32 0.0, %v681
    %v683 = vpop.f32.mrb[0].mxu0
    %v684 = vpop.f32.mrb[0].mxu0
    %v685 = vadd.f32 0.0, %v684
    %v686 = vpop.f32.mrb[0].mxu0
    %687 = vmatprep.mubr.bf16.mxu0 0
    %688 = vmatmul.mubr.bf16.gmra.mrb[0].mxu0 %v368
    %v689 = vpop.f32.mrb[0].mxu0
    %v690 = vadd.f32 0.0, %v689
    %v691 = vpop.f32.mrb[0].mxu0
    %v692 = vpop.f32.mrb[0].mxu0
    %v693 = vadd.f32 0.0, %v692
    %v694 = vpop.f32.mrb[0].mxu0
    %695 = vmatprep.mubr.bf16.mxu0 0
    %696 = vmatmul.mubr.bf16.gmra.mrb[0].mxu0 %v369
    %v697 = vpop.f32.mrb[0].mxu0
    %v698 = vadd.f32 0.0, %v697
    %v699 = vpop.f32.mrb[0].mxu0
    %v700 = vpop.f32.mrb[0].mxu0
    %v701 = vadd.f32 0.0, %v700
    %v702 = vpop.f32.mrb[0].mxu0
    %703 = vmatprep.mubr.bf16.mxu0 0
    %704 = vmatmul.mubr.bf16.gmra.mrb[0].mxu0 %v370
    %v705 = vpop.f32.mrb[0].mxu0
    %v706 = vadd.f32 0.0, %v705
    %v707 = vpop.f32.mrb[0].mxu0
    %v708 = vpop.f32.mrb[0].mxu0
    %v709 = vadd.f32 0.0, %v708
    %v710 = vpop.f32.mrb[0].mxu0
    %711 = vmatprep.mubr.bf16.mxu0 0
    %712 = vmatmul.mubr.bf16.gmra.mrb[0].mxu0 %v371
    %v713 = vpop.f32.mrb[0].mxu0
    %v714 = vadd.f32 0.0, %v713
    %v715 = vpop.f32.mrb[0].mxu0
    %v716 = vpop.f32.mrb[0].mxu0
    %v717 = vadd.f32 0.0, %v716
    %v718 = vpop.f32.mrb[0].mxu0
    %719 = vmatprep.mubr.bf16.mxu0 0
    %720 = vmatmul.mubr.bf16.gmra.mrb[0].mxu0 %v372
    %v721 = vpop.f32.mrb[0].mxu0
    %v722 = vadd.f32 0.0, %v721
    %v723 = vpop.f32.mrb[0].mxu0
    %v724 = vpop.f32.mrb[0].mxu0
    %v725 = vadd.f32 0.0, %v724
    %v726 = vpop.f32.mrb[0].mxu0
    %727 = vmatprep.mubr.bf16.mxu0 0
    %728 = vmatmul.mubr.bf16.gmra.mrb[0].mxu0 %v373
    %v729 = vpop.f32.mrb[0].mxu0
    %v730 = vadd.f32 0.0, %v729
    %v731 = vpop.f32.mrb[0].mxu0
    %v732 = vpop.f32.mrb[0].mxu0
    %v733 = vadd.f32 0.0, %v732
    %v734 = vpop.f32.mrb[0].mxu0
    %735 = vmatprep.mubr.bf16.mxu0 0
    %736 = vmatmul.mubr.bf16.gmra.mrb[0].mxu0 %v374
    %v737 = vpop.f32.mrb[0].mxu0
    %v738 = vadd.f32 0.0, %v737
    %v739 = vpop.f32.mrb[0].mxu0
    %v740 = vpop.f32.mrb[0].mxu0
    %v741 = vadd.f32 0.0, %v740
    %v742 = vpop.f32.mrb[0].mxu0
    %743 = vdwg.mxu0
    %744 = vst [vmem:[#allocation4] sm:$0xff] %v618
    %745 = vst [vmem:[#allocation4 + $0x8] sm:$0xff] %v621
    %746 = vst [vmem:[#allocation4 + $0x10] sm:$0xff] %v626
    %747 = vst [vmem:[#allocation4 + $0x18] sm:$0xff] %v629
    %748 = vst [vmem:[#allocation4 + $0x20] sm:$0xff] %v634
    %749 = vst [vmem:[#allocation4 + $0x28] sm:$0xff] %v637
    %750 = vst [vmem:[#allocation4 + $0x30] sm:$0xff] %v642
    %751 = vst [vmem:[#allocation4 + $0x38] sm:$0xff] %v645
    %752 = vst [vmem:[#allocation4 + $0x40] sm:$0xff] %v650
    %753 = vst [vmem:[#allocation4 + $0x48] sm:$0xff] %v653
    %754 = vst [vmem:[#allocation4 + $0x50] sm:$0xff] %v658
    %755 = vst [vmem:[#allocation4 + $0x58] sm:$0xff] %v661
    %756 = vst [vmem:[#allocation4 + $0x60] sm:$0xff] %v666
    %757 = vst [vmem:[#allocation4 + $0x68] sm:$0xff] %v669
    %758 = vst [vmem:[#allocation4 + $0x70] sm:$0xff] %v674
    %759 = vst [vmem:[#allocation4 + $0x78] sm:$0xff] %v677
    %760 = vst [vmem:[#allocation4 + $0x80] sm:$0xff] %v682
    %761 = vst [vmem:[#allocation4 + $0x88] sm:$0xff] %v685
    %762 = vst [vmem:[#allocation4 + $0x90] sm:$0xff] %v690
    %763 = vst [vmem:[#allocation4 + $0x98] sm:$0xff] %v693
    %764 = vst [vmem:[#allocation4 + $0xa0] sm:$0xff] %v698
    %765 = vst [vmem:[#allocation4 + $0xa8] sm:$0xff] %v701
    %766 = vst [vmem:[#allocation4 + $0xb0] sm:$0xff] %v706
    %767 = vst [vmem:[#allocation4 + $0xb8] sm:$0xff] %v709
    %768 = vst [vmem:[#allocation4 + $0xc0] sm:$0xff] %v714
    %769 = vst [vmem:[#allocation4 + $0xc8] sm:$0xff] %v717
    %770 = vst [vmem:[#allocation4 + $0xd0] sm:$0xff] %v722
    %771 = vst [vmem:[#allocation4 + $0xd8] sm:$0xff] %v725
    %772 = vst [vmem:[#allocation4 + $0xe0] sm:$0xff] %v730
    %773 = vst [vmem:[#allocation4 + $0xe8] sm:$0xff] %v733
    %774 = vst [vmem:[#allocation4 + $0xf0] sm:$0xff] %v738
    %775 = vst [vmem:[#allocation4 + $0xf8] sm:$0xff] %v741
    // Predicated region
    $region14: #{tpu_custom_call.1} parent=1 // pred_check
      _
    $region15: #{tpu_custom_call.1} parent=1 // pred_check_branch
      %777 = sbr.rel (0) target = $region17
    $region16: #{tpu_custom_call.1} parent=1 // pred_region
      %s779 = ssub.s32 2048, 2048
      %780 = vsyncadd [#allocation3], %s779
      %s781 = sshll.u32 [#allocation2], 4
      %s782 = int_to_ptr.vmem [resolvable:$true] %s781
      %787 = dma.vmem_to_hbm [thread:$0]  %s782, 2048, %s3, [#allocation3], 64, 64, 4
    $region17: #{tpu_custom_call.1} parent=1 // pred_fallthru
      _
    // Predicated region
    $region18: #{tpu_custom_call.1} parent=1 // pred_check
      _
    $region19: #{tpu_custom_call.1} parent=1 // pred_check_branch
      %789 = sbr.rel (0) target = $region21
    $region20: #{tpu_custom_call.1} parent=1 // pred_region
      %s791 = ssub.s32 4096, 4096
      %792 = vsyncadd [#allocation5], %s791
      %s793 = sshll.u32 [#allocation4], 4
      %s794 = int_to_ptr.vmem [resolvable:$true] %s793
      %799 = dma.vmem_to_hbm [thread:$0]  %s794, 4096, %s4, [#allocation5], 128, 128, 8
    $region21: #{tpu_custom_call.1} parent=1 // pred_fallthru
      _
    // Predicated region
    $region22: #{tpu_custom_call.1} parent=1 // pred_check
      _
    $region23: #{tpu_custom_call.1} parent=1 // pred_check_branch
      %801 = sbr.rel (0) target = $region25
    $region24: #{tpu_custom_call.1} parent=1 // pred_region
      %802 = dma.done [#allocation3], 2048
    $region25: #{tpu_custom_call.1} parent=1 // pred_fallthru
      _
    // Predicated region
    $region26: #{tpu_custom_call.1} parent=1 // pred_check
      _
    $region27: #{tpu_custom_call.1} parent=1 // pred_check_branch
      %804 = sbr.rel (0) target = $region29
    $region28: #{tpu_custom_call.1} parent=1 // pred_region
      %805 = dma.done [#allocation5], 4096
    $region29: #{tpu_custom_call.1} parent=1 // pred_fallthru
      _
    %806 = vsyncpa [#allocation3], 1
    %807 = vsyncpa [#allocation5], 1

</llo_original>
